<compile_context>
chip_gen: v7x
topology: tpu7x:2x2x1
jax: 0.10.0
libtpu: 0.0.40
codegen_flags: <defaults>
</compile_context>

<pallas_src>
import jax
import jax.numpy as jnp
from jax.experimental import pallas as pl
from jax.experimental.pallas import tpu as pltpu


def _round_up(x, m):
    return ((x + m - 1) // m) * m


def _tcl_kernel(xq_ref, xk_ref, wq_ref, bq_ref, wk_ref, bk_ref, q_ref, k_ref):
    # query head: q = xq @ Wq + bq
    q_ref[...] = (
        jnp.dot(xq_ref[...], wq_ref[...], preferred_element_type=jnp.float32)
        + bq_ref[...]
    ).astype(q_ref.dtype)
    # key head: k = xk @ Wk + bk
    k_ref[...] = (
        jnp.dot(xk_ref[...], wk_ref[...], preferred_element_type=jnp.float32)
        + bk_ref[...]
    ).astype(k_ref.dtype)


def tcl_forward(x, wq, bq, wk, bk, *, tm=128):
    """TCLModel forward.

    x        : [B, 2, D]  (x[:,0,:] -> query encoder, x[:,1,:] -> key encoder)
    wq, wk   : [D, C]
    bq, bk   : [C]
    returns (query, key), each [B, C] float32.
    """
    B, two, D = x.shape
    assert two == 2, "TCLModel expects x[:, 0, :] and x[:, 1, :]"
    C = wq.shape[1]

    # Lane-dense padding: D, C -> multiples of 128; B -> multiple of the batch tile.
    Dp = _round_up(D, 128)
    Cp = _round_up(C, 128)
    TM = tm if B >= tm else _round_up(B, 8)
    Bp = _round_up(B, TM)

    xq = jnp.zeros((Bp, Dp), x.dtype).at[:B, :D].set(x[:, 0, :])
    xk = jnp.zeros((Bp, Dp), x.dtype).at[:B, :D].set(x[:, 1, :])
    wqp = jnp.zeros((Dp, Cp), wq.dtype).at[:D, :C].set(wq)
    wkp = jnp.zeros((Dp, Cp), wk.dtype).at[:D, :C].set(wk)
    bqp = jnp.zeros((1, Cp), bq.dtype).at[0, :C].set(bq)
    bkp = jnp.zeros((1, Cp), bk.dtype).at[0, :C].set(bk)

    grid = (Bp // TM,)

    q_pad, k_pad = pl.pallas_call(
        _tcl_kernel,
        out_shape=(
            jax.ShapeDtypeStruct((Bp, Cp), jnp.float32),
            jax.ShapeDtypeStruct((Bp, Cp), jnp.float32),
        ),
        grid_spec=pltpu.PrefetchScalarGridSpec(
            num_scalar_prefetch=0,
            grid=grid,
            in_specs=[
                pl.BlockSpec((TM, Dp), lambda i: (i, 0)),   # xq tile (pipelined)
                pl.BlockSpec((TM, Dp), lambda i: (i, 0)),   # xk tile (pipelined)
                pl.BlockSpec((Dp, Cp), lambda i: (0, 0)),   # Wq (VMEM-resident)
                pl.BlockSpec((1, Cp), lambda i: (0, 0)),    # bq (VMEM-resident)
                pl.BlockSpec((Dp, Cp), lambda i: (0, 0)),   # Wk (VMEM-resident)
                pl.BlockSpec((1, Cp), lambda i: (0, 0)),    # bk (VMEM-resident)
            ],
            out_specs=[
                pl.BlockSpec((TM, Cp), lambda i: (i, 0)),   # query tile
                pl.BlockSpec((TM, Cp), lambda i: (i, 0)),   # key tile
            ],
        ),
        compiler_params=pltpu.CompilerParams(
            dimension_semantics=("parallel",),
        ),
    )(xq, xk, wqp, bqp, wkp, bkp)

    return q_pad[:B, :C], k_pad[:B, :C]


if __name__ == "__main__":
    # Small shapes consistent with a projection head: batch=8, hidden=32, out-dim=16.
    B, D, C = 8, 32, 16

    key = jax.random.PRNGKey(0)
    kx, kw, kb = jax.random.split(key, 3)

    # x[:, 0, :] feeds the query encoder, x[:, 1, :] feeds the key encoder.
    x = jax.random.normal(kx, (B, 2, D), dtype=jnp.float32)

    # Query-encoder (projection head) parameters.
    wq = jax.random.normal(kw, (D, C), dtype=jnp.float32) * (1.0 / jnp.sqrt(D))
    bq = jax.random.normal(kb, (C,), dtype=jnp.float32) * 0.01
    # Key-encoder params are copies of the query-encoder params (as in __init__).
    wk = wq
    bk = bq

    q_out, k_out = tcl_forward(x, wq, bq, wk, bk)
    jax.block_until_ready(q_out)
    jax.block_until_ready(k_out)

    # Reference check in plain JAX.
    q_ref = x[:, 0, :] @ wq + bq
    k_ref = x[:, 1, :] @ wk + bk
    assert jnp.allclose(q_out, q_ref, atol=1e-5, rtol=1e-5)
    assert jnp.allclose(k_out, k_ref, atol=1e-5, rtol=1e-5)

    print("KERNEL_OK")
</pallas_src>

<mosaic_0001>
module attributes {stable_mosaic.version = 11 : i64} {
  func.func @_tcl_kernel(%arg0: i32, %arg1: memref<8x128xf32, #tpu.memory_space<vmem>>, %arg2: memref<8x128xf32, #tpu.memory_space<vmem>>, %arg3: memref<128x128xf32, #tpu.memory_space<vmem>>, %arg4: memref<1x128xf32, #tpu.memory_space<vmem>>, %arg5: memref<128x128xf32, #tpu.memory_space<vmem>>, %arg6: memref<1x128xf32, #tpu.memory_space<vmem>>, %arg7: memref<8x128xf32, #tpu.memory_space<vmem>>, %arg8: memref<8x128xf32, #tpu.memory_space<vmem>>) attributes {dimension_semantics = [#tpu.dimension_semantics<parallel>], iteration_bounds = array<i64: 1>, scalar_prefetch = 0 : i64, scratch_operands = 0 : i64, tpu.core_type = #tpu.core_type<tc>, window_params = [{transform_indices = @transform_0, window_bounds = array<i64: 8, 128>}, {transform_indices = @transform_1, window_bounds = array<i64: 8, 128>}, {pipeline_mode = #tpu.pipeline_mode<synchronous>, transform_indices = @transform_2, window_bounds = array<i64: 128, 128>}, {pipeline_mode = #tpu.pipeline_mode<synchronous>, transform_indices = @transform_3, window_bounds = array<i64: 1, 128>}, {pipeline_mode = #tpu.pipeline_mode<synchronous>, transform_indices = @transform_4, window_bounds = array<i64: 128, 128>}, {pipeline_mode = #tpu.pipeline_mode<synchronous>, transform_indices = @transform_5, window_bounds = array<i64: 1, 128>}, {transform_indices = @transform_6, window_bounds = array<i64: 8, 128>}, {transform_indices = @transform_7, window_bounds = array<i64: 8, 128>}]} {
    %c0 = arith.constant 0 : index
    %c0_0 = arith.constant 0 : index
    %0 = vector.load %arg1[%c0, %c0_0] : memref<8x128xf32, #tpu.memory_space<vmem>>, vector<8x128xf32>
    %c0_1 = arith.constant 0 : index
    %c0_2 = arith.constant 0 : index
    %1 = vector.load %arg3[%c0_1, %c0_2] : memref<128x128xf32, #tpu.memory_space<vmem>>, vector<128x128xf32>
    %cst = arith.constant dense<0.000000e+00> : vector<8x128xf32>
    %2 = tpu.matmul %0, %1, %cst {dimension_numbers = #tpu.dot_dimension_numbers<[1], [0], [0], [1], [0, 0, 1, 1], [], []>} : vector<8x128xf32>, vector<128x128xf32>, vector<8x128xf32> -> vector<8x128xf32>
    %c0_3 = arith.constant 0 : index
    %c0_4 = arith.constant 0 : index
    %3 = vector.load %arg4[%c0_3, %c0_4] : memref<1x128xf32, #tpu.memory_space<vmem>>, vector<1x128xf32>
    %4 = vector.broadcast %3 : vector<1x128xf32> to vector<8x128xf32>
    %5 = arith.addf %2, %4 : vector<8x128xf32>
    %c0_5 = arith.constant 0 : index
    %c0_6 = arith.constant 0 : index
    %6 = vector.load %arg7[%c0_5, %c0_6] : memref<8x128xf32, #tpu.memory_space<vmem>>, vector<8x128xf32>
    tpu.vector_store %arg7[%c0_5, %c0_6], %5 {strides = array<i32>} : memref<8x128xf32, #tpu.memory_space<vmem>>, vector<8x128xf32>,
    %c0_7 = arith.constant 0 : index
    %c0_8 = arith.constant 0 : index
    %7 = vector.load %arg2[%c0_7, %c0_8] : memref<8x128xf32, #tpu.memory_space<vmem>>, vector<8x128xf32>
    %c0_9 = arith.constant 0 : index
    %c0_10 = arith.constant 0 : index
    %8 = vector.load %arg5[%c0_9, %c0_10] : memref<128x128xf32, #tpu.memory_space<vmem>>, vector<128x128xf32>
    %cst_11 = arith.constant dense<0.000000e+00> : vector<8x128xf32>
    %9 = tpu.matmul %7, %8, %cst_11 {dimension_numbers = #tpu.dot_dimension_numbers<[1], [0], [0], [1], [0, 0, 1, 1], [], []>} : vector<8x128xf32>, vector<128x128xf32>, vector<8x128xf32> -> vector<8x128xf32>
    %c0_12 = arith.constant 0 : index
    %c0_13 = arith.constant 0 : index
    %10 = vector.load %arg6[%c0_12, %c0_13] : memref<1x128xf32, #tpu.memory_space<vmem>>, vector<1x128xf32>
    %11 = vector.broadcast %10 : vector<1x128xf32> to vector<8x128xf32>
    %12 = arith.addf %9, %11 : vector<8x128xf32>
    %c0_14 = arith.constant 0 : index
    %c0_15 = arith.constant 0 : index
    %13 = vector.load %arg8[%c0_14, %c0_15] : memref<8x128xf32, #tpu.memory_space<vmem>>, vector<8x128xf32>
    tpu.vector_store %arg8[%c0_14, %c0_15], %12 {strides = array<i32>} : memref<8x128xf32, #tpu.memory_space<vmem>>, vector<8x128xf32>,
    return
  }
  func.func @transform_0(%arg0: i32) -> (i32, i32) {
    %c0_i32 = arith.constant 0 : i32
    %c0_i32_0 = arith.constant 0 : i32
    return %arg0, %c0_i32 : i32, i32
  }
  func.func @transform_1(%arg0: i32) -> (i32, i32) {
    %c0_i32 = arith.constant 0 : i32
    %c0_i32_0 = arith.constant 0 : i32
    return %arg0, %c0_i32 : i32, i32
  }
  func.func @transform_2(%arg0: i32) -> (i32, i32) {
    %c0_i32 = arith.constant 0 : i32
    %c0_i32_0 = arith.constant 0 : i32
    %c0_i32_1 = arith.constant 0 : i32
    return %c0_i32, %c0_i32_0 : i32, i32
  }
  func.func @transform_3(%arg0: i32) -> (i32, i32) {
    %c0_i32 = arith.constant 0 : i32
    %c0_i32_0 = arith.constant 0 : i32
    %c0_i32_1 = arith.constant 0 : i32
    return %c0_i32, %c0_i32_0 : i32, i32
  }
  func.func @transform_4(%arg0: i32) -> (i32, i32) {
    %c0_i32 = arith.constant 0 : i32
    %c0_i32_0 = arith.constant 0 : i32
    %c0_i32_1 = arith.constant 0 : i32
    return %c0_i32, %c0_i32_0 : i32, i32
  }
  func.func @transform_5(%arg0: i32) -> (i32, i32) {
    %c0_i32 = arith.constant 0 : i32
    %c0_i32_0 = arith.constant 0 : i32
    %c0_i32_1 = arith.constant 0 : i32
    return %c0_i32, %c0_i32_0 : i32, i32
  }
  func.func @transform_6(%arg0: i32) -> (i32, i32) {
    %c0_i32 = arith.constant 0 : i32
    %c0_i32_0 = arith.constant 0 : i32
    return %arg0, %c0_i32 : i32, i32
  }
  func.func @transform_7(%arg0: i32) -> (i32, i32) {
    %c0_i32 = arith.constant 0 : i32
    %c0_i32_0 = arith.constant 0 : i32
    return %arg0, %c0_i32 : i32, i32
  }
}

</mosaic_0001>

<llo_original>
// kernel: tpu_custom_call.1
$region0: #{tpu_custom_call.1}
  #allocation0 [shape = 'u32[]', space=smem, size = 0x4, offset = 0x4, fixed_abs, tag = 'smem constant byte address 0x4 - core index']
  #allocation1 [shape = 'u32[144,128]{1,0:T(1,128)}', space=vmem, size = 0x12000, scoped, tag = 'internal scratch']
  %s0 = inlined_call_operand.hbm [shape: f32[8,128], index: 0, kind: input, shape index: {}]
  %s1 = inlined_call_operand.hbm [shape: f32[8,128], index: 1, kind: input, shape index: {}]
  %s2 = inlined_call_operand.hbm [shape: f32[128,128], index: 2, kind: input, shape index: {}]
  %s3 = inlined_call_operand.vmem [shape: f32[1,128], index: 3, kind: input, shape index: {}]
  %s4 = inlined_call_operand.hbm [shape: f32[128,128], index: 4, kind: input, shape index: {}]
  %s5 = inlined_call_operand.vmem [shape: f32[1,128], index: 5, kind: input, shape index: {}]
  %s6 = inlined_call_operand.hbm [shape: f32[8,128], index: 6, kind: output, shape index: {0}]
  %s7 = inlined_call_operand.hbm [shape: f32[8,128], index: 7, kind: output, shape index: {1}]
  %8 = xla_tuple %s6, %s7
  %s9 = sld [smem:[#allocation0]]
  $region58: #{tpu_custom_call.1} parent=0
    _
  %s11 = ssub.s32 1, %s9
  %s12 = scalar_select 0, %s11, %s9
  $region1: #{tpu_custom_call.1} parent=0
    #allocation2 [shape = 'u8[4096]{0}', space=vmem, size = 0x1000, scoped, tag = 'input window, operand 0, single buffered']
    #allocation3 [shape = 's32[1]{0}', space=sflag, size = 0x4, scoped, tag = 'scoped memory for tpu_custom_call.1']
    #allocation4 [shape = 's32[1]{0}', space=sflag, size = 0x4, scoped, tag = 'scoped memory for tpu_custom_call.1']
    #allocation5 [shape = 'u8[4096]{0}', space=vmem, size = 0x1000, scoped, tag = 'input window, operand 1, single buffered']
    #allocation6 [shape = 's32[1]{0}', space=sflag, size = 0x4, scoped, tag = 'scoped memory for tpu_custom_call.1']
    #allocation7 [shape = 'u8[65536]{0}', space=vmem, size = 0x10000, scoped, tag = 'input window, operand 2, single buffered']
    #allocation8 [shape = 'u8[65536]{0}', space=vmem, size = 0x10000, scoped, tag = 'input window, operand 4, single buffered']
    #allocation9 [shape = 's32[1]{0}', space=sflag, size = 0x4, scoped, tag = 'scoped memory for tpu_custom_call.1']
    #allocation10 [shape = 'u8[4096]{0}', space=vmem, size = 0x1000, scoped, tag = 'output window, operand 0, single buffered']
    #allocation11 [shape = 'u8[4096]{0}', space=vmem, size = 0x1000, scoped, tag = 'output window, operand 1, single buffered']
    #allocation12 [shape = 's32[1]{0}', space=sflag, size = 0x4, scoped, tag = 'scoped memory for tpu_custom_call.1']
    %13 = vsyncpa [#allocation3], 0
    %14 = vsyncpa [#allocation6], 0
    %15 = vsyncpa [#allocation9], 0
    %16 = vsyncpa [#allocation4], 0
    %17 = vsyncpa [#allocation12], 0
    // Predicated region
    $region2: #{tpu_custom_call.1} parent=1 // pred_check
      _
    $region3: #{tpu_custom_call.1} parent=1 // pred_check_branch
      %19 = sbr.rel (0) target = $region5
    $region4: #{tpu_custom_call.1} parent=1 // pred_region
      %s21 = ssub.s32 128, 128
      %22 = vsyncadd [#allocation3], %s21
      %s24 = sshll.u32 [#allocation2], 4
      %s25 = int_to_ptr.vmem [resolvable:$true] %s24
      %27 = dma.hbm_to_vmem [thread:$0]  %s0, 128, %s25, [#allocation3]
    $region5: #{tpu_custom_call.1} parent=1 // pred_fallthru
      _
    // Predicated region
    $region6: #{tpu_custom_call.1} parent=1 // pred_check
      _
    $region7: #{tpu_custom_call.1} parent=1 // pred_check_branch
      %29 = sbr.rel (0) target = $region9
    $region8: #{tpu_custom_call.1} parent=1 // pred_region
      %s31 = ssub.s32 128, 128
      %32 = vsyncadd [#allocation6], %s31
      %s34 = sshll.u32 [#allocation5], 4
      %s35 = int_to_ptr.vmem [resolvable:$true] %s34
      %37 = dma.hbm_to_vmem [thread:$0]  %s1, 128, %s35, [#allocation6]
    $region9: #{tpu_custom_call.1} parent=1 // pred_fallthru
      _
    // Predicated region
    $region10: #{tpu_custom_call.1} parent=1 // pred_check
      _
    $region11: #{tpu_custom_call.1} parent=1 // pred_check_branch
      %39 = sbr.rel (0) target = $region13
    $region12: #{tpu_custom_call.1} parent=1 // pred_region
      %s41 = ssub.s32 2048, 2048
      %42 = vsyncadd [#allocation6], %s41
      %s43 = sshll.u32 [#allocation7], 4
      %s44 = int_to_ptr.vmem [resolvable:$true] %s43
      %49 = dma.hbm_to_vmem [thread:$0]  %s2, 2048, %s44, [#allocation6], 128, 128, 8
    $region13: #{tpu_custom_call.1} parent=1 // pred_fallthru
      _
    // Predicated region
    $region14: #{tpu_custom_call.1} parent=1 // pred_check
      _
    $region15: #{tpu_custom_call.1} parent=1 // pred_check_branch
      %51 = sbr.rel (0) target = $region17
    $region16: #{tpu_custom_call.1} parent=1 // pred_region
      _
    $region17: #{tpu_custom_call.1} parent=1 // pred_fallthru
      _
    // Predicated region
    $region18: #{tpu_custom_call.1} parent=1 // pred_check
      _
    $region19: #{tpu_custom_call.1} parent=1 // pred_check_branch
      %53 = sbr.rel (0) target = $region21
    $region20: #{tpu_custom_call.1} parent=1 // pred_region
      %s55 = ssub.s32 2048, 2048
      %56 = vsyncadd [#allocation9], %s55
      %s57 = sshll.u32 [#allocation8], 4
      %s58 = int_to_ptr.vmem [resolvable:$true] %s57
      %63 = dma.hbm_to_vmem [thread:$0]  %s4, 2048, %s58, [#allocation9], 128, 128, 8
    $region21: #{tpu_custom_call.1} parent=1 // pred_fallthru
      _
    // Predicated region
    $region22: #{tpu_custom_call.1} parent=1 // pred_check
      _
    $region23: #{tpu_custom_call.1} parent=1 // pred_check_branch
      %65 = sbr.rel (0) target = $region25
    $region24: #{tpu_custom_call.1} parent=1 // pred_region
      _
    $region25: #{tpu_custom_call.1} parent=1 // pred_fallthru
      _
    // Predicated region
    $region26: #{tpu_custom_call.1} parent=1 // pred_check
      _
    $region27: #{tpu_custom_call.1} parent=1 // pred_check_branch
      %67 = sbr.rel (0) target = $region29
    $region28: #{tpu_custom_call.1} parent=1 // pred_region
      %68 = dma.done [#allocation3], 128
    $region29: #{tpu_custom_call.1} parent=1 // pred_fallthru
      _
    // Predicated region
    $region30: #{tpu_custom_call.1} parent=1 // pred_check
      _
    $region31: #{tpu_custom_call.1} parent=1 // pred_check_branch
      %70 = sbr.rel (0) target = $region33
    $region32: #{tpu_custom_call.1} parent=1 // pred_region
      %71 = dma.done [#allocation6], 128
    $region33: #{tpu_custom_call.1} parent=1 // pred_fallthru
      _
    // Predicated region
    $region34: #{tpu_custom_call.1} parent=1 // pred_check
      _
    $region35: #{tpu_custom_call.1} parent=1 // pred_check_branch
      %73 = sbr.rel (0) target = $region37
    $region36: #{tpu_custom_call.1} parent=1 // pred_region
      %74 = dma.done [#allocation6], 2048
    $region37: #{tpu_custom_call.1} parent=1 // pred_fallthru
      _
    // Predicated region
    $region38: #{tpu_custom_call.1} parent=1 // pred_check
      _
    $region39: #{tpu_custom_call.1} parent=1 // pred_check_branch
      %76 = sbr.rel (0) target = $region41
    $region40: #{tpu_custom_call.1} parent=1 // pred_region
      %77 = dma.done [#allocation9], 2048
    $region41: #{tpu_custom_call.1} parent=1 // pred_fallthru
      _
    %v78 = vld [vmem:[#allocation2] sm:$0xff]
    %v79 = vld [vmem:[#allocation7] sm:$0xff]
    %v80 = vld [vmem:[#allocation7 + $0x8] sm:$0xff]
    %v81 = vld [vmem:[#allocation7 + $0x10] sm:$0xff]
    %v82 = vld [vmem:[#allocation7 + $0x18] sm:$0xff]
    %v83 = vld [vmem:[#allocation7 + $0x20] sm:$0xff]
    %v84 = vld [vmem:[#allocation7 + $0x28] sm:$0xff]
    %v85 = vld [vmem:[#allocation7 + $0x30] sm:$0xff]
    %v86 = vld [vmem:[#allocation7 + $0x38] sm:$0xff]
    %v87 = vld [vmem:[#allocation7 + $0x40] sm:$0xff]
    %v88 = vld [vmem:[#allocation7 + $0x48] sm:$0xff]
    %v89 = vld [vmem:[#allocation7 + $0x50] sm:$0xff]
    %v90 = vld [vmem:[#allocation7 + $0x58] sm:$0xff]
    %v91 = vld [vmem:[#allocation7 + $0x60] sm:$0xff]
    %v92 = vld [vmem:[#allocation7 + $0x68] sm:$0xff]
    %v93 = vld [vmem:[#allocation7 + $0x70] sm:$0xff]
    %v94 = vld [vmem:[#allocation7 + $0x78] sm:$0xff]
    %v95 = vld [vmem:[%s3] sm:$0x1]
    %v97 = vlaneseq
    %v98 = vshrl.u32 %v97, 7
    %v99 = vsub.s32 0, %v98
    %v100 = vrot.slane %v95, %v99
    %102 = vmatprep.subr.mxu0 0.0
    %103 = vmatpush1.msra.mxu0 %v79
    %104 = vmatprep.subr.mxu0 0.0
    %105 = vmatpush1.msra.mxu0 %v80
    %106 = vmatprep.subr.mxu0 0.0
    %107 = vmatpush1.msra.mxu0 %v81
    %108 = vmatprep.subr.mxu0 0.0
    %109 = vmatpush1.msra.mxu0 %v82
    %110 = vmatprep.subr.mxu0 0.0
    %111 = vmatpush1.msra.mxu0 %v83
    %112 = vmatprep.subr.mxu0 0.0
    %113 = vmatpush1.msra.mxu0 %v84
    %114 = vmatprep.subr.mxu0 0.0
    %115 = vmatpush1.msra.mxu0 %v85
    %116 = vmatprep.subr.mxu0 0.0
    %117 = vmatpush1.msra.mxu0 %v86
    %118 = vmatprep.subr.mxu0 0.0
    %119 = vmatpush1.msra.mxu0 %v87
    %120 = vmatprep.subr.mxu0 0.0
    %121 = vmatpush1.msra.mxu0 %v88
    %122 = vmatprep.subr.mxu0 0.0
    %123 = vmatpush1.msra.mxu0 %v89
    %124 = vmatprep.subr.mxu0 0.0
    %125 = vmatpush1.msra.mxu0 %v90
    %126 = vmatprep.subr.mxu0 0.0
    %127 = vmatpush1.msra.mxu0 %v91
    %128 = vmatprep.subr.mxu0 0.0
    %129 = vmatpush1.msra.mxu0 %v92
    %130 = vmatprep.subr.mxu0 0.0
    %131 = vmatpush1.msra.mxu0 %v93
    %132 = vmatprep.subr.mxu0 0.0
    %133 = vmatpush1.msra.mxu0 %v94
    %134 = vmatprep.subr.mxu0 0.0
    %135 = vmatpush1.msra.mxu0 0.0
    %136 = vmatprep.subr.mxu0 0.0
    %137 = vmatpush1.msra.mxu0 0.0
    %138 = vmatprep.subr.mxu0 0.0
    %139 = vmatpush1.msra.mxu0 0.0
    %140 = vmatprep.subr.mxu0 0.0
    %141 = vmatpush1.msra.mxu0 0.0
    %142 = vmatprep.subr.mxu0 0.0
    %143 = vmatpush1.msra.mxu0 0.0
    %144 = vmatprep.subr.mxu0 0.0
    %145 = vmatpush1.msra.mxu0 0.0
    %146 = vmatprep.subr.mxu0 0.0
    %147 = vmatpush1.msra.mxu0 0.0
    %148 = vmatprep.subr.mxu0 0.0
    %149 = vmatpush1.msra.mxu0 0.0
    %150 = vmatprep.subr.mxu0 0.0
    %151 = vmatpush1.msra.mxu0 0.0
    %152 = vmatprep.subr.mxu0 0.0
    %153 = vmatpush1.msra.mxu0 0.0
    %154 = vmatprep.subr.mxu0 0.0
    %155 = vmatpush1.msra.mxu0 0.0
    %156 = vmatprep.subr.mxu0 0.0
    %157 = vmatpush1.msra.mxu0 0.0
    %158 = vmatprep.subr.mxu0 0.0
    %159 = vmatpush1.msra.mxu0 0.0
    %160 = vmatprep.subr.mxu0 0.0
    %161 = vmatpush1.msra.mxu0 0.0
    %162 = vmatprep.subr.mxu0 0.0
    %163 = vmatpush1.msra.mxu0 0.0
    %164 = vmatprep.subr.mxu0 0.0
    %165 = vmatpush1.msra.mxu0 0.0
    %166 = vmatprep.mubr.f32.mxu0 0.0
    %167 = vmatmul.mubr.f32.gmra.mrb[0].mxu0 %v78
    %v168 = vpop.f32.mrb[0].mxu0
    %v169 = vadd.f32 %v100, %v168
    %v170 = vpop.f32.mrb[0].mxu0
    %171 = vdwg.mxu0
    %172 = vst [vmem:[#allocation10] sm:$0xff] %v169
    %v173 = vld [vmem:[#allocation5] sm:$0xff]
    %v174 = vld [vmem:[#allocation8] sm:$0xff]
    %v175 = vld [vmem:[#allocation8 + $0x8] sm:$0xff]
    %v176 = vld [vmem:[#allocation8 + $0x10] sm:$0xff]
    %v177 = vld [vmem:[#allocation8 + $0x18] sm:$0xff]
    %v178 = vld [vmem:[#allocation8 + $0x20] sm:$0xff]
    %v179 = vld [vmem:[#allocation8 + $0x28] sm:$0xff]
    %v180 = vld [vmem:[#allocation8 + $0x30] sm:$0xff]
    %v181 = vld [vmem:[#allocation8 + $0x38] sm:$0xff]
    %v182 = vld [vmem:[#allocation8 + $0x40] sm:$0xff]
    %v183 = vld [vmem:[#allocation8 + $0x48] sm:$0xff]
    %v184 = vld [vmem:[#allocation8 + $0x50] sm:$0xff]
    %v185 = vld [vmem:[#allocation8 + $0x58] sm:$0xff]
    %v186 = vld [vmem:[#allocation8 + $0x60] sm:$0xff]
    %v187 = vld [vmem:[#allocation8 + $0x68] sm:$0xff]
    %v188 = vld [vmem:[#allocation8 + $0x70] sm:$0xff]
    %v189 = vld [vmem:[#allocation8 + $0x78] sm:$0xff]
    %v190 = vld [vmem:[%s5] sm:$0x1]
    %v192 = vlaneseq
    %v193 = vshrl.u32 %v192, 7
    %v194 = vsub.s32 0, %v193
    %v195 = vrot.slane %v190, %v194
    %197 = vmatprep.subr.mxu0 0.0
    %198 = vmatpush1.msra.mxu0 %v174
    %199 = vmatprep.subr.mxu0 0.0
    %200 = vmatpush1.msra.mxu0 %v175
    %201 = vmatprep.subr.mxu0 0.0
    %202 = vmatpush1.msra.mxu0 %v176
    %203 = vmatprep.subr.mxu0 0.0
    %204 = vmatpush1.msra.mxu0 %v177
    %205 = vmatprep.subr.mxu0 0.0
    %206 = vmatpush1.msra.mxu0 %v178
    %207 = vmatprep.subr.mxu0 0.0
    %208 = vmatpush1.msra.mxu0 %v179
    %209 = vmatprep.subr.mxu0 0.0
    %210 = vmatpush1.msra.mxu0 %v180
    %211 = vmatprep.subr.mxu0 0.0
    %212 = vmatpush1.msra.mxu0 %v181
    %213 = vmatprep.subr.mxu0 0.0
    %214 = vmatpush1.msra.mxu0 %v182
    %215 = vmatprep.subr.mxu0 0.0
    %216 = vmatpush1.msra.mxu0 %v183
    %217 = vmatprep.subr.mxu0 0.0
    %218 = vmatpush1.msra.mxu0 %v184
    %219 = vmatprep.subr.mxu0 0.0
    %220 = vmatpush1.msra.mxu0 %v185
    %221 = vmatprep.subr.mxu0 0.0
    %222 = vmatpush1.msra.mxu0 %v186
    %223 = vmatprep.subr.mxu0 0.0
    %224 = vmatpush1.msra.mxu0 %v187
    %225 = vmatprep.subr.mxu0 0.0
    %226 = vmatpush1.msra.mxu0 %v188
    %227 = vmatprep.subr.mxu0 0.0
    %228 = vmatpush1.msra.mxu0 %v189
    %229 = vmatprep.subr.mxu0 0.0
    %230 = vmatpush1.msra.mxu0 0.0
    %231 = vmatprep.subr.mxu0 0.0
    %232 = vmatpush1.msra.mxu0 0.0
    %233 = vmatprep.subr.mxu0 0.0
    %234 = vmatpush1.msra.mxu0 0.0
    %235 = vmatprep.subr.mxu0 0.0
    %236 = vmatpush1.msra.mxu0 0.0
    %237 = vmatprep.subr.mxu0 0.0
    %238 = vmatpush1.msra.mxu0 0.0
    %239 = vmatprep.subr.mxu0 0.0
    %240 = vmatpush1.msra.mxu0 0.0
    %241 = vmatprep.subr.mxu0 0.0
    %242 = vmatpush1.msra.mxu0 0.0
    %243 = vmatprep.subr.mxu0 0.0
    %244 = vmatpush1.msra.mxu0 0.0
    %245 = vmatprep.subr.mxu0 0.0
    %246 = vmatpush1.msra.mxu0 0.0
    %247 = vmatprep.subr.mxu0 0.0
    %248 = vmatpush1.msra.mxu0 0.0
    %249 = vmatprep.subr.mxu0 0.0
    %250 = vmatpush1.msra.mxu0 0.0
    %251 = vmatprep.subr.mxu0 0.0
    %252 = vmatpush1.msra.mxu0 0.0
    %253 = vmatprep.subr.mxu0 0.0
    %254 = vmatpush1.msra.mxu0 0.0
    %255 = vmatprep.subr.mxu0 0.0
    %256 = vmatpush1.msra.mxu0 0.0
    %257 = vmatprep.subr.mxu0 0.0
    %258 = vmatpush1.msra.mxu0 0.0
    %259 = vmatprep.subr.mxu0 0.0
    %260 = vmatpush1.msra.mxu0 0.0
    %261 = vmatprep.mubr.f32.mxu0 0.0
    %262 = vmatmul.mubr.f32.gmra.mrb[0].mxu0 %v173
    %v263 = vpop.f32.mrb[0].mxu0
    %v264 = vadd.f32 %v195, %v263
    %v265 = vpop.f32.mrb[0].mxu0
    %266 = vdwg.mxu0
    %267 = vst [vmem:[#allocation11] sm:$0xff] %v264
    // Predicated region
    $region42: #{tpu_custom_call.1} parent=1 // pred_check
      _
    $region43: #{tpu_custom_call.1} parent=1 // pred_check_branch
      %269 = sbr.rel (0) target = $region45
    $region44: #{tpu_custom_call.1} parent=1 // pred_region
      %s271 = ssub.s32 128, 128
      %272 = vsyncadd [#allocation4], %s271
      %s274 = sshll.u32 [#allocation10], 4
      %s275 = int_to_ptr.vmem [resolvable:$true] %s274
      %277 = dma.vmem_to_hbm [thread:$0]  %s275, 128, %s6, [#allocation4]
    $region45: #{tpu_custom_call.1} parent=1 // pred_fallthru
      _
    // Predicated region
    $region46: #{tpu_custom_call.1} parent=1 // pred_check
      _
    $region47: #{tpu_custom_call.1} parent=1 // pred_check_branch
      %279 = sbr.rel (0) target = $region49
    $region48: #{tpu_custom_call.1} parent=1 // pred_region
      %s281 = ssub.s32 128, 128
      %282 = vsyncadd [#allocation12], %s281
      %s284 = sshll.u32 [#allocation11], 4
      %s285 = int_to_ptr.vmem [resolvable:$true] %s284
      %287 = dma.vmem_to_hbm [thread:$0]  %s285, 128, %s7, [#allocation12]
    $region49: #{tpu_custom_call.1} parent=1 // pred_fallthru
      _
    // Predicated region
    $region50: #{tpu_custom_call.1} parent=1 // pred_check
      _
    $region51: #{tpu_custom_call.1} parent=1 // pred_check_branch
      %289 = sbr.rel (0) target = $region53
    $region52: #{tpu_custom_call.1} parent=1 // pred_region
      %290 = dma.done [#allocation4], 128
    $region53: #{tpu_custom_call.1} parent=1 // pred_fallthru
      _
    // Predicated region
    $region54: #{tpu_custom_call.1} parent=1 // pred_check
      _
    $region55: #{tpu_custom_call.1} parent=1 // pred_check_branch
      %292 = sbr.rel (0) target = $region57
    $region56: #{tpu_custom_call.1} parent=1 // pred_region
      %293 = dma.done [#allocation12], 128
    $region57: #{tpu_custom_call.1} parent=1 // pred_fallthru
      _
    %294 = vsyncpa [#allocation3], 1
    %295 = vsyncpa [#allocation6], 1
    %296 = vsyncpa [#allocation9], 1
    %297 = vsyncpa [#allocation4], 1
    %298 = vsyncpa [#allocation12], 1

</llo_original>
